<compile_context>
chip_gen: v6e
topology: v6e:2x2x1
jax: 0.10.0
libtpu: 0.0.40
codegen_flags: <defaults>
</compile_context>

<pallas_src>
import functools
import math

import jax
import jax.numpy as jnp
from jax import lax
from jax.experimental import pallas as pl
from jax.experimental.pallas import tpu as pltpu

_NEG_BIG = -1e30  # large finite negative: avoids inf-inf -> NaN on masked tiles


def _qkv_proj_kernel(x_ref, w_ref, qkv_ref, *, d_out, scale):
    """Fused QKV projection for one row-tile of the flattened (B*T, D_in) input."""
    x = x_ref[...]                        # (tm, D_in)
    w = w_ref[...]                        # (3*D_out, D_in), PyTorch (out, in) layout
    # Single MXU pass over x: contract D_in of x with D_in of w -> (tm, 3*D_out).
    qkv = lax.dot_general(x, w, (((1,), (1,)), ((), ())),
                          preferred_element_type=jnp.float32)
    # Fold the 1/sqrt(d) scale into the Q columns (full-width select, no slicing).
    col = lax.broadcasted_iota(jnp.int32, qkv.shape, 1)
    qkv = jnp.where(col < d_out, qkv * scale, qkv)
    qkv_ref[...] = qkv.astype(qkv_ref.dtype)


def _flash_attn_kernel(q_ref, k_ref, v_ref, o_ref, m_sc, l_sc, acc_sc, *, tq, tk):
    """Online-softmax causal attention for one (batch, q-tile, kv-tile) grid step."""
    qi = pl.program_id(1)
    ki = pl.program_id(2)

    @pl.when(ki == 0)
    def _init():
        m_sc[...] = jnp.full(m_sc.shape, _NEG_BIG, m_sc.dtype)
        l_sc[...] = jnp.zeros(l_sc.shape, l_sc.dtype)
        acc_sc[...] = jnp.zeros(acc_sc.shape, acc_sc.dtype)

    # Causal tile skip: tile contributes only if its first key position is
    # <= the last query position of this q-tile.
    @pl.when(ki * tk <= (qi + 1) * tq - 1)
    def _compute():
        q = q_ref[0]                      # (tq, D_out), already scaled by 1/sqrt(d)
        k = k_ref[0]                      # (tk, D_out)
        v = v_ref[0]                      # (tk, D_out)

        # Q @ K^T without materializing a transpose: contract axis 1 of both.
        s = lax.dot_general(q, k, (((1,), (1,)), ((), ())),
                            preferred_element_type=jnp.float32)   # (tq, tk)

        # Tile-local causal mask from global row/col offsets (finite negative).
        row = lax.broadcasted_iota(jnp.int32, (tq, tk), 0) + qi * tq
        col = lax.broadcasted_iota(jnp.int32, (tq, tk), 1) + ki * tk
        s = jnp.where(col > row, _NEG_BIG, s)

        m_prev = m_sc[...]
        m_new = jnp.maximum(m_prev, jnp.max(s, axis=-1, keepdims=True))
        alpha = jnp.exp(m_prev - m_new)
        p = jnp.exp(s - m_new)

        l_sc[...] = alpha * l_sc[...] + jnp.sum(p, axis=-1, keepdims=True)
        acc_sc[...] = alpha * acc_sc[...] + jnp.dot(
            p.astype(v.dtype), v, preferred_element_type=jnp.float32)
        m_sc[...] = m_new

    @pl.when(ki == pl.num_programs(2) - 1)
    def _finalize():
        # Dropout (eval mode) == identity on the attention weights.
        l = l_sc[...]
        inv = pl.reciprocal(l, approx=True)          # EUP slot (essentially free)
        inv = inv * (2.0 - l * inv)                  # one Newton step -> f32 accurate
        o_ref[0] = (acc_sc[...] * inv).astype(o_ref.dtype)


def _pick_tile(n, cap):
    """Largest tile <= cap that divides n."""
    t = min(n, cap)
    while n % t != 0:
        t -= 1
    return t


def causal_attention(x, w_query, w_key, w_value):
    """x: (B, T, D_in); w_*: PyTorch-style (D_out, D_in) Linear weights (no bias)."""
    B, T, D_in = x.shape
    D_out = w_query.shape[0]
    scale = 1.0 / math.sqrt(D_out)
    dtype = x.dtype

    # ---------- Stage 1: fused QKV projection over flattened (B*T) rows ----------
    # Keep weights in (D_out, D_in) layout (no transposes); just stack them.
    w_qkv = jnp.concatenate([w_query, w_key, w_value], axis=0)   # (3*D_out, D_in)
    rows = B * T
    x2d = x.reshape(rows, D_in)
    tm = _pick_tile(rows, 256)

    qkv2d = pl.pallas_call(
        functools.partial(_qkv_proj_kernel, d_out=D_out, scale=scale),
        out_shape=jax.ShapeDtypeStruct((rows, 3 * D_out), dtype),
        grid_spec=pltpu.PrefetchScalarGridSpec(
            num_scalar_prefetch=0,
            grid=(rows // tm,),
            in_specs=[
                pl.BlockSpec((tm, D_in), lambda i: (i, 0)),
                pl.BlockSpec((3 * D_out, D_in), lambda i: (0, 0)),
            ],
            out_specs=pl.BlockSpec((tm, 3 * D_out), lambda i: (i, 0)),
        ),
        compiler_params=pltpu.CompilerParams(
            dimension_semantics=("parallel",)),
    )(x2d, w_qkv)
    qkv3d = qkv2d.reshape(B, T, 3 * D_out)

    # ---------- Stage 2: flash attention over (batch, q-tile, kv-tile) ----------
    # 128-sized tiles fit every generation's VMEM budget (incl. v7x's 64 MiB).
    tq = _pick_tile(T, 128)
    tk = _pick_tile(T, 128)

    if D_out % 128 == 0:
        # Lane-dense path: feed the fused array directly; BlockSpec column-block
        # indexing (last-dim block 0/1/2) does the q/k/v split via DMA.
        q_in, k_in, v_in = qkv3d, qkv3d, qkv3d
        q_spec = pl.BlockSpec((1, tq, D_out), lambda b, i, j: (b, i, 0))
        k_spec = pl.BlockSpec((1, tk, D_out), lambda b, i, j: (b, j, 1))
        v_spec = pl.BlockSpec((1, tk, D_out), lambda b, i, j: (b, j, 2))
    else:
        # Small D_out (toy case): split in the wrapper so each kernel operand's
        # last dim equals its full array dim (satisfies the (8,128) block rule).
        q_in = qkv3d[..., :D_out]
        k_in = qkv3d[..., D_out:2 * D_out]
        v_in = qkv3d[..., 2 * D_out:]
        q_spec = pl.BlockSpec((1, tq, D_out), lambda b, i, j: (b, i, 0))
        k_spec = pl.BlockSpec((1, tk, D_out), lambda b, i, j: (b, j, 0))
        v_spec = pl.BlockSpec((1, tk, D_out), lambda b, i, j: (b, j, 0))

    return pl.pallas_call(
        functools.partial(_flash_attn_kernel, tq=tq, tk=tk),
        out_shape=jax.ShapeDtypeStruct((B, T, D_out), dtype),
        grid_spec=pltpu.PrefetchScalarGridSpec(
            num_scalar_prefetch=0,
            grid=(B, T // tq, T // tk),
            in_specs=[q_spec, k_spec, v_spec],
            out_specs=pl.BlockSpec((1, tq, D_out), lambda b, i, j: (b, i, 0)),
            scratch_shapes=[
                pltpu.VMEM((tq, 1), jnp.float32),      # running max  m
                pltpu.VMEM((tq, 1), jnp.float32),      # running sum  l
                pltpu.VMEM((tq, D_out), jnp.float32),  # output accumulator
            ],
        ),
        compiler_params=pltpu.CompilerParams(
            dimension_semantics=("parallel", "parallel", "arbitrary"),
            vmem_limit_bytes=48 * 1024 * 1024),
    )(q_in, k_in, v_in)


def _reference(x, w_query, w_key, w_value):
    """Plain-JAX reference matching the PyTorch forward (eval mode)."""
    q = x @ w_query.T
    k = x @ w_key.T
    v = x @ w_value.T
    scores = jnp.einsum("btd,bsd->bts", q, k)
    T = x.shape[1]
    mask = jnp.triu(jnp.ones((T, T), bool), k=1)
    scores = jnp.where(mask[None], -jnp.inf, scores)
    w = jax.nn.softmax(scores / math.sqrt(k.shape[-1]), axis=-1)
    return w @ v


if __name__ == "__main__":
    # Small shapes consistent with the module: batch=2, seq=8, hidden=32.
    B, T = 2, 8
    D_in, D_out = 32, 32

    key = jax.random.PRNGKey(0)
    kx, kq, kk, kv = jax.random.split(key, 4)

    x = jax.random.normal(kx, (B, T, D_in), dtype=jnp.float32)
    # Deterministic "Linear" weights, PyTorch layout (out_features, in_features), no bias.
    bound = 1.0 / math.sqrt(D_in)
    w_query = jax.random.uniform(kq, (D_out, D_in), jnp.float32, -bound, bound)
    w_key = jax.random.uniform(kk, (D_out, D_in), jnp.float32, -bound, bound)
    w_value = jax.random.uniform(kv, (D_out, D_in), jnp.float32, -bound, bound)

    out = causal_attention(x, w_query, w_key, w_value)
    out = jax.block_until_ready(out)

    ref = _reference(x, w_query, w_key, w_value)
    assert out.shape == (B, T, D_out)
    assert jnp.allclose(out, ref, atol=1e-3, rtol=1e-3), "mismatch vs reference"

    print("KERNEL_OK")
</pallas_src>

<mosaic_0001>
module attributes {stable_mosaic.version = 11 : i64} {
  func.func @_qkv_proj_kernel(%arg0: i32, %arg1: memref<16x32xf32, #tpu.memory_space<vmem>>, %arg2: memref<96x32xf32, #tpu.memory_space<vmem>>, %arg3: memref<16x96xf32, #tpu.memory_space<vmem>>) attributes {dimension_semantics = [#tpu.dimension_semantics<parallel>], iteration_bounds = array<i64: 1>, scalar_prefetch = 0 : i64, scratch_operands = 0 : i64, tpu.core_type = #tpu.core_type<tc>, window_params = [{transform_indices = @transform_0, window_bounds = array<i64: 16, 32>}, {pipeline_mode = #tpu.pipeline_mode<synchronous>, transform_indices = @transform_1, window_bounds = array<i64: 96, 32>}, {transform_indices = @transform_2, window_bounds = array<i64: 16, 96>}]} {
    %c0 = arith.constant 0 : index
    %c0_0 = arith.constant 0 : index
    %0 = vector.load %arg1[%c0, %c0_0] : memref<16x32xf32, #tpu.memory_space<vmem>>, vector<16x32xf32>
    %c0_1 = arith.constant 0 : index
    %c0_2 = arith.constant 0 : index
    %1 = vector.load %arg2[%c0_1, %c0_2] : memref<96x32xf32, #tpu.memory_space<vmem>>, vector<96x32xf32>
    %cst = arith.constant dense<0.000000e+00> : vector<16x96xf32>
    %2 = tpu.matmul %0, %1, %cst {dimension_numbers = #tpu.dot_dimension_numbers<[1], [1], [0], [0], [0, 0, 1, 0], [], []>} : vector<16x32xf32>, vector<96x32xf32>, vector<16x96xf32> -> vector<16x96xf32>
    %3 = tpu.iota {dimensions = array<i32: 1>} : vector<16x96xi32>
    %c32_i32 = arith.constant 32 : i32
    %4 = vector.broadcast %c32_i32 : i32 to vector<16x96xi32>
    %5 = arith.cmpi slt, %3, %4 : vector<16x96xi32>
    %cst_3 = arith.constant 0.176776692 : f32
    %6 = vector.broadcast %cst_3 : f32 to vector<16x96xf32>
    %7 = arith.mulf %2, %6 : vector<16x96xf32>
    %8 = arith.select %5, %7, %2 : vector<16x96xi1>, vector<16x96xf32>
    %c0_4 = arith.constant 0 : index
    %c0_5 = arith.constant 0 : index
    %9 = vector.load %arg3[%c0_4, %c0_5] : memref<16x96xf32, #tpu.memory_space<vmem>>, vector<16x96xf32>
    tpu.vector_store %arg3[%c0_4, %c0_5], %8 {strides = array<i32>} : memref<16x96xf32, #tpu.memory_space<vmem>>, vector<16x96xf32>,
    return
  }
  func.func @transform_0(%arg0: i32) -> (i32, i32) {
    %c0_i32 = arith.constant 0 : i32
    %c0_i32_0 = arith.constant 0 : i32
    return %arg0, %c0_i32 : i32, i32
  }
  func.func @transform_1(%arg0: i32) -> (i32, i32) {
    %c0_i32 = arith.constant 0 : i32
    %c0_i32_0 = arith.constant 0 : i32
    %c0_i32_1 = arith.constant 0 : i32
    return %c0_i32, %c0_i32_0 : i32, i32
  }
  func.func @transform_2(%arg0: i32) -> (i32, i32) {
    %c0_i32 = arith.constant 0 : i32
    %c0_i32_0 = arith.constant 0 : i32
    return %arg0, %c0_i32 : i32, i32
  }
}

</mosaic_0001>

<llo_original>
// kernel: tpu_custom_call.1
$region0: #{tpu_custom_call.1}
  #allocation0 [shape = 'u32[]', space=smem, size = 0x4, offset = 0x4, fixed_abs, tag = 'smem constant byte address 0x4 - core index']
  #allocation1 [shape = 'u32[144,128]{1,0:T(1,128)}', space=vmem, size = 0x12000, scoped, tag = 'internal scratch']
  %s0 = inlined_call_operand.vmem [shape: f32[16,32], index: 0, kind: input, shape index: {}]
  %s1 = inlined_call_operand.vmem [shape: f32[96,32], index: 1, kind: input, shape index: {}]
  %s2 = inlined_call_operand.hbm [shape: f32[16,96], index: 2, kind: output, shape index: {}]
  %s3 = sld [smem:[#allocation0]]
  $region18: #{tpu_custom_call.1} parent=0
    _
  %s5 = ssub.s32 1, %s3
  %s6 = scalar_select 0, %s5, %s3
  $region1: #{tpu_custom_call.1} parent=0
    #allocation2 [shape = 'u8[8192]{0}', space=vmem, size = 0x2000, scoped, tag = 'output window, operand 0, single buffered']
    #allocation3 [shape = 's32[1]{0}', space=sflag, size = 0x4, scoped, tag = 'scoped memory for tpu_custom_call.1']
    %7 = vsyncpa [#allocation3], 0
    // Predicated region
    $region2: #{tpu_custom_call.1} parent=1 // pred_check
      _
    $region3: #{tpu_custom_call.1} parent=1 // pred_check_branch
      %9 = sbr.rel (0) target = $region5
    $region4: #{tpu_custom_call.1} parent=1 // pred_region
      _
    $region5: #{tpu_custom_call.1} parent=1 // pred_fallthru
      _
    // Predicated region
    $region6: #{tpu_custom_call.1} parent=1 // pred_check
      _
    $region7: #{tpu_custom_call.1} parent=1 // pred_check_branch
      %11 = sbr.rel (0) target = $region9
    $region8: #{tpu_custom_call.1} parent=1 // pred_region
      _
    $region9: #{tpu_custom_call.1} parent=1 // pred_fallthru
      _
    %v12 = vld [vmem:[%s0] sm:$0xff]
    %v13 = vld [vmem:[%s0 + $0x8] sm:$0xff]
    %v14 = vld [vmem:[%s1] sm:$0xff]
    %v15 = vld [vmem:[%s1 + $0x8] sm:$0xff]
    %v16 = vld [vmem:[%s1 + $0x10] sm:$0xff]
    %v17 = vld [vmem:[%s1 + $0x18] sm:$0xff]
    %v18 = vld [vmem:[%s1 + $0x20] sm:$0xff]
    %v19 = vld [vmem:[%s1 + $0x28] sm:$0xff]
    %v20 = vld [vmem:[%s1 + $0x30] sm:$0xff]
    %v21 = vld [vmem:[%s1 + $0x38] sm:$0xff]
    %v22 = vld [vmem:[%s1 + $0x40] sm:$0xff]
    %v23 = vld [vmem:[%s1 + $0x48] sm:$0xff]
    %v24 = vld [vmem:[%s1 + $0x50] sm:$0xff]
    %v25 = vld [vmem:[%s1 + $0x58] sm:$0xff]
    %vm26 = vcmask 261120
    %v28 = vsel %vm26, %v12, 0
    %v31 = vsel %vm26, %v13, 0
    %v34 = vsel %vm26, %v14, 0
    %v37 = vsel %vm26, %v15, 0
    %v40 = vsel %vm26, %v16, 0
    %v43 = vsel %vm26, %v17, 0
    %v46 = vsel %vm26, %v18, 0
    %v49 = vsel %vm26, %v19, 0
    %v52 = vsel %vm26, %v20, 0
    %v55 = vsel %vm26, %v21, 0
    %v58 = vsel %vm26, %v22, 0
    %v61 = vsel %vm26, %v23, 0
    %v64 = vsel %vm26, %v24, 0
    %v67 = vsel %vm26, %v25, 0
    %69 = vmatprep.subr.mxu0 0.0
    %70 = vmatpush1.xpose.msra.mxu0 0.0
    %71 = vmatprep.subr.mxu0 0.0
    %72 = vmatpush1.xpose.msra.mxu0 0.0
    %73 = vmatprep.subr.mxu0 0.0
    %74 = vmatpush1.xpose.msra.mxu0 0.0
    %75 = vmatprep.subr.mxu0 0.0
    %76 = vmatpush1.xpose.msra.mxu0 0.0
    %77 = vmatprep.subr.mxu0 0.0
    %78 = vmatpush1.xpose.msra.mxu0 %v67
    %79 = vmatprep.subr.mxu0 0.0
    %80 = vmatpush1.xpose.msra.mxu0 %v64
    %81 = vmatprep.subr.mxu0 0.0
    %82 = vmatpush1.xpose.msra.mxu0 %v61
    %83 = vmatprep.subr.mxu0 0.0
    %84 = vmatpush1.xpose.msra.mxu0 %v58
    %85 = vmatprep.subr.mxu0 0.0
    %86 = vmatpush1.xpose.msra.mxu0 %v55
    %87 = vmatprep.subr.mxu0 0.0
    %88 = vmatpush1.xpose.msra.mxu0 %v52
    %89 = vmatprep.subr.mxu0 0.0
    %90 = vmatpush1.xpose.msra.mxu0 %v49
    %91 = vmatprep.subr.mxu0 0.0
    %92 = vmatpush1.xpose.msra.mxu0 %v46
    %93 = vmatprep.subr.mxu0 0.0
    %94 = vmatpush1.xpose.msra.mxu0 %v43
    %95 = vmatprep.subr.mxu0 0.0
    %96 = vmatpush1.xpose.msra.mxu0 %v40
    %97 = vmatprep.subr.mxu0 0.0
    %98 = vmatpush1.xpose.msra.mxu0 %v37
    %99 = vmatprep.subr.mxu0 0.0
    %100 = vmatpush1.xpose.msra.mxu0 %v34
    %101 = vmatprep.subr.mxu0 0.0
    %102 = vmatpush2.xpose.msra.mxu0 0.0
    %103 = vmatprep.subr.mxu0 0.0
    %104 = vmatpush2.xpose.msra.mxu0 0.0
    %105 = vmatprep.subr.mxu0 0.0
    %106 = vmatpush2.xpose.msra.mxu0 0.0
    %107 = vmatprep.subr.mxu0 0.0
    %108 = vmatpush2.xpose.msra.mxu0 0.0
    %109 = vmatprep.subr.mxu0 0.0
    %110 = vmatpush2.xpose.msra.mxu0 0.0
    %111 = vmatprep.subr.mxu0 0.0
    %112 = vmatpush2.xpose.msra.mxu0 0.0
    %113 = vmatprep.subr.mxu0 0.0
    %114 = vmatpush2.xpose.msra.mxu0 0.0
    %115 = vmatprep.subr.mxu0 0.0
    %116 = vmatpush2.xpose.msra.mxu0 0.0
    %117 = vmatprep.subr.mxu0 0.0
    %118 = vmatpush2.xpose.msra.mxu0 0.0
    %119 = vmatprep.subr.mxu0 0.0
    %120 = vmatpush2.xpose.msra.mxu0 0.0
    %121 = vmatprep.subr.mxu0 0.0
    %122 = vmatpush2.xpose.msra.mxu0 0.0
    %123 = vmatprep.subr.mxu0 0.0
    %124 = vmatpush2.xpose.msra.mxu0 0.0
    %125 = vmatprep.subr.mxu0 0.0
    %126 = vmatpush2.xpose.msra.mxu0 0.0
    %127 = vmatprep.subr.mxu0 0.0
    %128 = vmatpush2.xpose.msra.mxu0 0.0
    %129 = vmatprep.subr.mxu0 0.0
    %130 = vmatpush2.xpose.msra.mxu0 0.0
    %131 = vmatprep.subr.mxu0 0.0
    %132 = vmatpush2.xpose.msra.mxu0 0.0
    %133 = vmatprep.mubr.f32.mxu0 0.0
    %134 = vmatmul.mubr.f32.gmra.mxu0 %v28
    %v135 = vpop.f32.mrf.mxu0
    %v136 = vadd.f32 0.0, %v135
    %v137 = vpop.f32.mrf.mxu0
    %138 = vmatprep.mubr.f32.mxu0 0.0
    %139 = vmatmul.mubr.f32.gmra.mxu0 %v31
    %v140 = vpop.f32.mrf.mxu0
    %v141 = vadd.f32 0.0, %v140
    %v142 = vpop.f32.mrf.mxu0
    %143 = vdwg.mxu0
    %v144 = vlaneseq
    %v145 = vand.u32 %v144, 127
    %vm146 = vcmp.lt.s32.totalorder %v145, 32
    %v147 = vmul.f32 %v136, 0.17677669
    %v148 = vmul.f32 %v141, 0.17677669
    %v149 = vsel %vm146, %v147, %v136
    %v150 = vsel %vm146, %v148, %v141
    %vm151 = vcmask 785408
    %152 = vst.msk [vmem:[#allocation2] sm:$0xff] %vm151, %v149
    %153 = vst.msk [vmem:[#allocation2 + $0x8] sm:$0xff] %vm151, %v150
    // Predicated region
    $region10: #{tpu_custom_call.1} parent=1 // pred_check
      _
    $region11: #{tpu_custom_call.1} parent=1 // pred_check_branch
      %155 = sbr.rel (0) target = $region13
    $region12: #{tpu_custom_call.1} parent=1 // pred_region
      %s157 = ssub.s32 256, 256
      %158 = vsyncadd [#allocation3], %s157
      %s159 = sshll.u32 [#allocation2], 4
      %s160 = int_to_ptr.vmem [resolvable:$true] %s159
      %165 = dma.vmem_to_hbm [thread:$0]  %s160, 256, %s2, [#allocation3], 128, 128, 8
    $region13: #{tpu_custom_call.1} parent=1 // pred_fallthru
      _
    // Predicated region
    $region14: #{tpu_custom_call.1} parent=1 // pred_check
      _
    $region15: #{tpu_custom_call.1} parent=1 // pred_check_branch
      %167 = sbr.rel (0) target = $region17
    $region16: #{tpu_custom_call.1} parent=1 // pred_region
      %168 = dma.done [#allocation3], 256
    $region17: #{tpu_custom_call.1} parent=1 // pred_fallthru
      _
    %169 = vsyncpa [#allocation3], 1

</llo_original>
